<compile_context>
chip_gen: v7x
topology: tpu7x:2x2x1
jax: 0.10.0
libtpu: 0.0.40
codegen_flags: <defaults>
</compile_context>

<pallas_src>
from functools import partial

import numpy as np
import jax
import jax.numpy as jnp
from jax import lax
from jax.experimental import pallas as pl
from jax.experimental.pallas import tpu as pltpu

OUT_CHANNELS = 16               # get_edge_filter repeats the 3x3 filter 16x
_TARGET_BLOCK_PIXELS = 16384    # ~1 MiB of f32 output per grid step


def _sobel_kernel(H, W, x_ref, o_ref):
    # x_ref: (B, 1, H*W) flattened images (lane-dense).
    # o_ref: (B, 16, H*W) gradient map replicated over 16 channels.
    HW = H * W
    x = x_ref[...].astype(jnp.float32)              # (B, 1, HW)
    B = x.shape[0]

    idx = lax.broadcasted_iota(jnp.int32, (B, 1, HW), 2)
    col = idx % W
    zero = jnp.zeros_like(x)
    first_col = col == 0
    last_col = col == W - 1
    first_row = idx < W
    last_row = idx >= HW - W

    # In-kernel halo: lane rolls (XLU) + edge masks reproduce the conv's zero
    # padding.  Positive shifts only (roll by HW-k == roll by -k).
    x_l = jnp.where(first_col, zero, pltpu.roll(x, shift=1, axis=2))        # x(i, j-1)
    x_r = jnp.where(last_col, zero, pltpu.roll(x, shift=HW - 1, axis=2))    # x(i, j+1)

    # Separable Sobel with hardcoded +-1/+-2 taps (zero taps dropped).
    dcol = x_r - x_l                 # x(i,j+1) - x(i,j-1)
    scol = x_l + (x + x) + x_r       # x(i,j-1) + 2 x(i,j) + x(i,j+1)

    dcol_up = jnp.where(first_row, zero, pltpu.roll(dcol, shift=W, axis=2))       # dcol(i-1, j)
    dcol_dn = jnp.where(last_row, zero, pltpu.roll(dcol, shift=HW - W, axis=2))   # dcol(i+1, j)
    scol_up = jnp.where(first_row, zero, pltpu.roll(scol, shift=W, axis=2))       # scol(i-1, j)
    scol_dn = jnp.where(last_row, zero, pltpu.roll(scol, shift=HW - W, axis=2))   # scol(i+1, j)

    gx = dcol_up + (dcol + dcol) + dcol_dn
    gy = scol_dn - scol_up
    g = (jnp.abs(gx) + jnp.abs(gy)).astype(o_ref.dtype)   # (B, 1, HW)

    # All 16 output channels are identical: replay the same data through the
    # store slot as two aligned, dense 8-sublane stores (no 16x intermediate).
    # TODO(synk): if the consumer could take (N,1,H,W) and broadcast lazily,
    # the 16x HBM writeback (the true bottleneck) would disappear entirely.
    g8 = jnp.broadcast_to(g, (B, 8, HW))
    o_ref[:, 0:8, :] = g8
    o_ref[:, 8:16, :] = g8


def gradient_map_generate(x):
    """x: (N, 1, H, W) -> (N, 16, H, W); all 16 output channels are identical."""
    N, C, H, W = x.shape
    assert C == 1, "module expects a single input channel"
    HW = H * W

    # Images per grid step: enough pixels to amortize the ~0.35 us/step
    # overhead while keeping double-buffered (in + 16x out) blocks comfortably
    # inside every generation's VMEM (v7x has only 64 MiB).
    b_tile = max(1, min(N, _TARGET_BLOCK_PIXELS // HW))
    while N % b_tile:          # keep the grid exact (no ragged tail block)
        b_tile -= 1
    grid = (N // b_tile,)

    # Raise the scoped-VMEM limit only when a single large image needs it.
    # TODO(synk): for very large images tile H into row bands with a 1-row halo
    # instead of one whole image per block.
    est_vmem = 100 * b_tile * HW * np.dtype(x.dtype).itemsize
    vmem_limit = 48 * 1024 * 1024 if est_vmem > 12 * 1024 * 1024 else None

    x_flat = x.reshape(N, 1, HW)   # free reshape; makes loads/stores lane-dense

    out_flat = pl.pallas_call(
        partial(_sobel_kernel, H, W),
        out_shape=jax.ShapeDtypeStruct((N, OUT_CHANNELS, HW), x.dtype),
        grid_spec=pltpu.PrefetchScalarGridSpec(
            num_scalar_prefetch=0,
            grid=grid,
            in_specs=[pl.BlockSpec((b_tile, 1, HW), lambda n: (n, 0, 0))],
            out_specs=pl.BlockSpec((b_tile, OUT_CHANNELS, HW), lambda n: (n, 0, 0)),
        ),
        compiler_params=pltpu.CompilerParams(
            dimension_semantics=("parallel",),   # batch blocks are independent
            vmem_limit_bytes=vmem_limit,
        ),
    )(x_flat)
    return out_flat.reshape(N, OUT_CHANNELS, H, W)


def _reference(x):
    """Pure-numpy reference of the PyTorch forward."""
    x = np.asarray(x)
    N, _, H, W = x.shape
    fx = np.array([[-1, 0, 1], [-2, 0, 2], [-1, 0, 1]], dtype=np.float32)
    fy = np.array([[-1, -2, -1], [0, 0, 0], [1, 2, 1]], dtype=np.float32)
    xp = np.pad(x, ((0, 0), (0, 0), (1, 1), (1, 1)))
    gx = np.zeros((N, 1, H, W), np.float32)
    gy = np.zeros((N, 1, H, W), np.float32)
    for di in range(3):
        for dj in range(3):
            t = xp[:, :, di:di + H, dj:dj + W]
            gx += fx[di, dj] * t
            gy += fy[di, dj] * t
    g = np.abs(gx) + np.abs(gy)
    return np.repeat(g, OUT_CHANNELS, axis=1)


if __name__ == "__main__":
    key = jax.random.PRNGKey(0)
    x = jax.random.normal(key, (2, 1, 16, 16), dtype=jnp.float32)

    out = jax.block_until_ready(gradient_map_generate(x))

    ref = _reference(np.asarray(x))
    assert out.shape == (2, OUT_CHANNELS, 16, 16), out.shape
    np.testing.assert_allclose(np.asarray(out), ref, rtol=1e-5, atol=1e-5)
    print("KERNEL_OK")
</pallas_src>

<mosaic_0001>
module attributes {stable_mosaic.version = 11 : i64} {
  func.func @_sobel_kernel(%arg0: i32, %arg1: memref<2x1x256xf32, #tpu.memory_space<vmem>>, %arg2: memref<2x16x256xf32, #tpu.memory_space<vmem>>) attributes {dimension_semantics = [#tpu.dimension_semantics<parallel>], iteration_bounds = array<i64: 1>, scalar_prefetch = 0 : i64, scratch_operands = 0 : i64, tpu.core_type = #tpu.core_type<tc>, window_params = [{transform_indices = @transform_0, window_bounds = array<i64: 2, 1, 256>}, {transform_indices = @transform_1, window_bounds = array<i64: 2, 16, 256>}]} {
    %c0 = arith.constant 0 : index
    %c0_0 = arith.constant 0 : index
    %c0_1 = arith.constant 0 : index
    %0 = vector.load %arg1[%c0, %c0_0, %c0_1] : memref<2x1x256xf32, #tpu.memory_space<vmem>>, vector<2x1x256xf32>
    %1 = tpu.iota {dimensions = array<i32: 2>} : vector<2x1x256xi32>
    %c16_i32 = arith.constant 16 : i32
    %c0_i32 = arith.constant 0 : i32
    %2 = arith.cmpi eq, %c16_i32, %c0_i32 : i32
    %c1_i32 = arith.constant 1 : i32
    %3 = arith.select %2, %c1_i32, %c16_i32 : i32
    %4 = vector.broadcast %3 : i32 to vector<2x1x256xi32>
    %5 = arith.remsi %1, %4 : vector<2x1x256xi32>
    %c0_i32_2 = arith.constant 0 : i32
    %6 = vector.broadcast %c0_i32_2 : i32 to vector<2x1x256xi32>
    %7 = arith.cmpi ne, %5, %6 : vector<2x1x256xi32>
    %c0_i32_3 = arith.constant 0 : i32
    %8 = vector.broadcast %c0_i32_3 : i32 to vector<2x1x256xi32>
    %9 = arith.cmpi slt, %5, %8 : vector<2x1x256xi32>
    %c0_i32_4 = arith.constant 0 : i32
    %10 = arith.cmpi slt, %3, %c0_i32_4 : i32
    %11 = vector.broadcast %10 : i1 to vector<2x1x256xi1>
    %12 = vector.broadcast %11 : vector<2x1x256xi1> to vector<2x1x256xi1>
    %13 = arith.xori %9, %12 : vector<2x1x256xi1>
    %14 = arith.andi %13, %7 : vector<2x1x256xi1>
    %15 = vector.broadcast %3 : i32 to vector<2x1x256xi32>
    %16 = arith.addi %5, %15 : vector<2x1x256xi32>
    %17 = arith.select %14, %16, %5 : vector<2x1x256xi1>, vector<2x1x256xi32>
    %cst = arith.constant 0.000000e+00 : f32
    %18 = vector.broadcast %cst : f32 to vector<2x1x256xf32>
    %c0_i32_5 = arith.constant 0 : i32
    %19 = vector.broadcast %c0_i32_5 : i32 to vector<2x1x256xi32>
    %20 = arith.cmpi eq, %17, %19 : vector<2x1x256xi32>
    %c15_i32 = arith.constant 15 : i32
    %21 = vector.broadcast %c15_i32 : i32 to vector<2x1x256xi32>
    %22 = arith.cmpi eq, %17, %21 : vector<2x1x256xi32>
    %c16_i32_6 = arith.constant 16 : i32
    %23 = vector.broadcast %c16_i32_6 : i32 to vector<2x1x256xi32>
    %24 = arith.cmpi slt, %1, %23 : vector<2x1x256xi32>
    %c240_i32 = arith.constant 240 : i32
    %25 = vector.broadcast %c240_i32 : i32 to vector<2x1x256xi32>
    %26 = arith.cmpi sge, %1, %25 : vector<2x1x256xi32>
    %c1_i32_7 = arith.constant 1 : i32
    %27 = tpu.dynamic_rotate %0 by %c1_i32_7 dim 2 : vector<2x1x256xf32>, i32 -> vector<2x1x256xf32>
    %28 = arith.select %20, %18, %27 : vector<2x1x256xi1>, vector<2x1x256xf32>
    %c255_i32 = arith.constant 255 : i32
    %29 = tpu.dynamic_rotate %0 by %c255_i32 dim 2 : vector<2x1x256xf32>, i32 -> vector<2x1x256xf32>
    %30 = arith.select %22, %18, %29 : vector<2x1x256xi1>, vector<2x1x256xf32>
    %31 = arith.subf %30, %28 : vector<2x1x256xf32>
    %32 = arith.addf %0, %0 : vector<2x1x256xf32>
    %33 = arith.addf %28, %32 : vector<2x1x256xf32>
    %34 = arith.addf %33, %30 : vector<2x1x256xf32>
    %c16_i32_8 = arith.constant 16 : i32
    %35 = tpu.dynamic_rotate %31 by %c16_i32_8 dim 2 : vector<2x1x256xf32>, i32 -> vector<2x1x256xf32>
    %36 = arith.select %24, %18, %35 : vector<2x1x256xi1>, vector<2x1x256xf32>
    %c240_i32_9 = arith.constant 240 : i32
    %37 = tpu.dynamic_rotate %31 by %c240_i32_9 dim 2 : vector<2x1x256xf32>, i32 -> vector<2x1x256xf32>
    %38 = arith.select %26, %18, %37 : vector<2x1x256xi1>, vector<2x1x256xf32>
    %c16_i32_10 = arith.constant 16 : i32
    %39 = tpu.dynamic_rotate %34 by %c16_i32_10 dim 2 : vector<2x1x256xf32>, i32 -> vector<2x1x256xf32>
    %40 = arith.select %24, %18, %39 : vector<2x1x256xi1>, vector<2x1x256xf32>
    %c240_i32_11 = arith.constant 240 : i32
    %41 = tpu.dynamic_rotate %34 by %c240_i32_11 dim 2 : vector<2x1x256xf32>, i32 -> vector<2x1x256xf32>
    %42 = arith.select %26, %18, %41 : vector<2x1x256xi1>, vector<2x1x256xf32>
    %43 = arith.addf %31, %31 : vector<2x1x256xf32>
    %44 = arith.addf %36, %43 : vector<2x1x256xf32>
    %45 = arith.addf %44, %38 : vector<2x1x256xf32>
    %46 = arith.subf %42, %40 : vector<2x1x256xf32>
    %47 = math.absf %45 : vector<2x1x256xf32>
    %48 = math.absf %46 : vector<2x1x256xf32>
    %49 = arith.addf %47, %48 : vector<2x1x256xf32>
    %50 = vector.shape_cast %49 : vector<2x1x256xf32> to vector<2x1x256xf32>
    %51 = vector.broadcast %50 : vector<2x1x256xf32> to vector<2x8x256xf32>
    %c0_12 = arith.constant 0 : index
    %c0_13 = arith.constant 0 : index
    %c0_14 = arith.constant 0 : index
    %52 = vector.load %arg2[%c0_12, %c0_13, %c0_14] : memref<2x16x256xf32, #tpu.memory_space<vmem>>, vector<2x8x256xf32>
    tpu.vector_store %arg2[%c0_12, %c0_13, %c0_14], %51 {strides = array<i32>} : memref<2x16x256xf32, #tpu.memory_space<vmem>>, vector<2x8x256xf32>,
    %c0_15 = arith.constant 0 : index
    %c8 = arith.constant 8 : index
    %c0_16 = arith.constant 0 : index
    %53 = vector.load %arg2[%c0_15, %c8, %c0_16] : memref<2x16x256xf32, #tpu.memory_space<vmem>>, vector<2x8x256xf32>
    tpu.vector_store %arg2[%c0_15, %c8, %c0_16], %51 {strides = array<i32>} : memref<2x16x256xf32, #tpu.memory_space<vmem>>, vector<2x8x256xf32>,
    return
  }
  func.func @transform_0(%arg0: i32) -> (i32, i32, i32) {
    %c0_i32 = arith.constant 0 : i32
    %c0_i32_0 = arith.constant 0 : i32
    %c0_i32_1 = arith.constant 0 : i32
    return %arg0, %c0_i32, %c0_i32_0 : i32, i32, i32
  }
  func.func @transform_1(%arg0: i32) -> (i32, i32, i32) {
    %c0_i32 = arith.constant 0 : i32
    %c0_i32_0 = arith.constant 0 : i32
    %c0_i32_1 = arith.constant 0 : i32
    return %arg0, %c0_i32, %c0_i32_0 : i32, i32, i32
  }
}

</mosaic_0001>

<llo_original>
// kernel: tpu_custom_call.1
$region0: #{tpu_custom_call.1}
  #allocation0 [shape = 'u32[]', space=smem, size = 0x4, offset = 0x4, fixed_abs, tag = 'smem constant byte address 0x4 - core index']
  #allocation1 [shape = 'u32[144,128]{1,0:T(1,128)}', space=vmem, size = 0x12000, scoped, tag = 'internal scratch']
  %s0 = inlined_call_operand.hbm [shape: f32[2,1,256], index: 0, kind: input, shape index: {}]
  %s1 = inlined_call_operand.hbm [shape: f32[2,16,256], index: 1, kind: output, shape index: {}]
  %s2 = sld [smem:[#allocation0]]
  $region18: #{tpu_custom_call.1} parent=0
    _
  %s4 = ssub.s32 1, %s2
  %s5 = scalar_select 0, %s4, %s2
  $region1: #{tpu_custom_call.1} parent=0
    #allocation2 [shape = 'u8[2048]{0}', space=vmem, size = 0x800, scoped, tag = 'input window, operand 0, single buffered']
    #allocation3 [shape = 's32[1]{0}', space=sflag, size = 0x4, scoped, tag = 'scoped memory for tpu_custom_call.1']
    #allocation4 [shape = 's32[1]{0}', space=sflag, size = 0x4, scoped, tag = 'scoped memory for tpu_custom_call.1']
    #allocation5 [shape = 'u8[32768]{0}', space=vmem, size = 0x8000, scoped, tag = 'output window, operand 0, single buffered']
    %6 = vsyncpa [#allocation3], 0
    %7 = vsyncpa [#allocation4], 0
    // Predicated region
    $region2: #{tpu_custom_call.1} parent=1 // pred_check
      _
    $region3: #{tpu_custom_call.1} parent=1 // pred_check_branch
      %9 = sbr.rel (0) target = $region5
    $region4: #{tpu_custom_call.1} parent=1 // pred_region
      %s11 = ssub.s32 64, 64
      %12 = vsyncadd [#allocation3], %s11
      %s13 = sshll.u32 [#allocation2], 4
      %s14 = int_to_ptr.vmem [resolvable:$true] %s13
      %19 = dma.hbm_to_vmem [thread:$0]  %s0, 64, %s14, [#allocation3], 32, 32, 2
    $region5: #{tpu_custom_call.1} parent=1 // pred_fallthru
      _
    // Predicated region
    $region6: #{tpu_custom_call.1} parent=1 // pred_check
      _
    $region7: #{tpu_custom_call.1} parent=1 // pred_check_branch
      %21 = sbr.rel (0) target = $region9
    $region8: #{tpu_custom_call.1} parent=1 // pred_region
      %22 = dma.done [#allocation3], 64
    $region9: #{tpu_custom_call.1} parent=1 // pred_fallthru
      _
    %v23 = vld [vmem:[#allocation2] sm:$0x3]
    %v24 = vld [vmem:[#allocation2 + $0x2] sm:$0x3]
    %v25 = vlaneseq
    %v26 = vand.u32 %v25, 127
    %v27 = vadd.s32 %v26, 128
    %vm28 = vcmp.lt.s32.totalorder %v26, 0
    %v29 = vsub.s32 0, %v26
    %v30 = vsel %vm28, %v29, %v26
    %v31 = vshrl.u32 %v30, 4
    %v32 = vand.u32 %v30, 15
    %v33 = vsub.s32 0, %v32
    %v34 = vsel %vm28, %v33, %v32
    %vm35 = vcmp.lt.s32.totalorder %v27, 0
    %v36 = vsub.s32 0, %v27
    %v37 = vsel %vm35, %v36, %v27
    %v38 = vshrl.u32 %v37, 4
    %v39 = vand.u32 %v37, 15
    %v40 = vsub.s32 0, %v39
    %v41 = vsel %vm35, %v40, %v39
    %vm42 = vcmp.ne.s32.totalorder %v34, 0
    %vm43 = vcmp.ne.s32.totalorder %v41, 0
    %vm44 = vcmp.lt.s32.totalorder %v34, 0
    %vm45 = vcmp.lt.s32.totalorder %v41, 0
    %vm46 = vmand %vm44, %vm42
    %vm47 = vmand %vm45, %vm43
    %v48 = vadd.s32 %v34, 16
    %v49 = vadd.s32 %v41, 16
    %v50 = vsel %vm46, %v48, %v34
    %v51 = vsel %vm47, %v49, %v41
    %vm52 = vcmp.eq.s32.totalorder %v50, 0
    %vm53 = vcmp.eq.s32.totalorder %v51, 0
    %vm54 = vcmp.eq.s32.totalorder %v50, 15
    %vm55 = vcmp.eq.s32.totalorder %v51, 15
    %vm56 = vcmp.lt.s32.totalorder %v26, 16
    %vm57 = vcmp.lt.s32.totalorder %v27, 16
    %vm58 = vcmp.ge.s32.totalorder %v26, 240
    %vm59 = vcmp.ge.s32.totalorder %v27, 240
    %v62 = vlaneseq
    %v63 = vshrl.u32 %v62, 7
    %v64 = vsub.s32 0, %v63
    %v65 = vrot.slane %v23, %v64
    %v66 = vlaneseq
    %v67 = vshrl.u32 %v66, 7
    %v68 = vsub.s32 1, %v67
    %v69 = vrot.slane %v23, %v68
    %v70 = vlaneseq
    %v71 = vshrl.u32 %v70, 7
    %v72 = vsub.s32 0, %v71
    %v73 = vrot.slane %v24, %v72
    %v74 = vlaneseq
    %v75 = vshrl.u32 %v74, 7
    %v76 = vsub.s32 1, %v75
    %v77 = vrot.slane %v24, %v76
    %82 = vrot.lane.b32.xlu0 %v65, 1
    %v83 = vpop.permute.xlu0 %82
    %84 = vrot.lane.b32.xlu0 %v73, 1
    %v85 = vpop.permute.xlu0 %84
    %86 = vrot.lane.b32.xlu0 %v69, 1
    %v87 = vpop.permute.xlu0 %86
    %88 = vrot.lane.b32.xlu0 %v77, 1
    %v89 = vpop.permute.xlu0 %88
    %vm90 = vcmp.lt.s32.totalorder %v26, 1
    %v91 = vsel %vm90, %v83, %v87
    %v92 = vsel %vm90, %v85, %v89
    %v93 = vsel %vm90, %v87, %v83
    %v94 = vsel %vm90, %v89, %v85
    %v95 = vsel %vm52, 0.0, %v93
    %v96 = vsel %vm53, 0.0, %v91
    %v97 = vsel %vm52, 0.0, %v94
    %v98 = vsel %vm53, 0.0, %v92
    %99 = vrot.lane.b32.xlu0 %v65, 127
    %v100 = vpop.permute.xlu0 %99
    %101 = vrot.lane.b32.xlu0 %v73, 127
    %v102 = vpop.permute.xlu0 %101
    %103 = vrot.lane.b32.xlu0 %v69, 127
    %v104 = vpop.permute.xlu0 %103
    %105 = vrot.lane.b32.xlu0 %v77, 127
    %v106 = vpop.permute.xlu0 %105
    %vm107 = vcmp.lt.s32.totalorder %v26, 127
    %v108 = vsel %vm107, %v100, %v104
    %v109 = vsel %vm107, %v102, %v106
    %v110 = vsel %vm107, %v104, %v100
    %v111 = vsel %vm107, %v106, %v102
    %v112 = vsel %vm54, 0.0, %v108
    %v113 = vsel %vm55, 0.0, %v110
    %v114 = vsel %vm54, 0.0, %v109
    %v115 = vsel %vm55, 0.0, %v111
    %v116 = vsub.f32 %v112, %v95
    %v117 = vsub.f32 %v113, %v96
    %v118 = vsub.f32 %v114, %v97
    %v119 = vsub.f32 %v115, %v98
    %v120 = vadd.f32 %v23, %v23
    %v121 = vadd.f32 %v24, %v24
    %v124 = vlaneseq
    %v125 = vshrl.u32 %v124, 7
    %v126 = vsub.s32 0, %v125
    %v127 = vrot.slane %v120, %v126
    %v128 = vlaneseq
    %v129 = vshrl.u32 %v128, 7
    %v130 = vsub.s32 1, %v129
    %v131 = vrot.slane %v120, %v130
    %v132 = vlaneseq
    %v133 = vshrl.u32 %v132, 7
    %v134 = vsub.s32 0, %v133
    %v135 = vrot.slane %v121, %v134
    %v136 = vlaneseq
    %v137 = vshrl.u32 %v136, 7
    %v138 = vsub.s32 1, %v137
    %v139 = vrot.slane %v121, %v138
    %v144 = vadd.f32 %v95, %v127
    %v145 = vadd.f32 %v96, %v131
    %v146 = vadd.f32 %v97, %v135
    %v147 = vadd.f32 %v98, %v139
    %v148 = vadd.f32 %v144, %v112
    %v149 = vadd.f32 %v145, %v113
    %v150 = vadd.f32 %v146, %v114
    %v151 = vadd.f32 %v147, %v115
    %152 = vrot.lane.b32.xlu0 %v116, 16
    %v153 = vpop.permute.xlu0 %152
    %154 = vrot.lane.b32.xlu0 %v118, 16
    %v155 = vpop.permute.xlu0 %154
    %156 = vrot.lane.b32.xlu0 %v117, 16
    %v157 = vpop.permute.xlu0 %156
    %158 = vrot.lane.b32.xlu0 %v119, 16
    %v159 = vpop.permute.xlu0 %158
    %v160 = vsel %vm56, %v153, %v157
    %v161 = vsel %vm56, %v155, %v159
    %v162 = vsel %vm56, %v157, %v153
    %v163 = vsel %vm56, %v159, %v155
    %v164 = vsel %vm56, 0.0, %v162
    %v165 = vsel %vm57, 0.0, %v160
    %v166 = vsel %vm56, 0.0, %v163
    %v167 = vsel %vm57, 0.0, %v161
    %168 = vrot.lane.b32.xlu0 %v116, 112
    %v169 = vpop.permute.xlu0 %168
    %170 = vrot.lane.b32.xlu0 %v118, 112
    %v171 = vpop.permute.xlu0 %170
    %172 = vrot.lane.b32.xlu0 %v117, 112
    %v173 = vpop.permute.xlu0 %172
    %174 = vrot.lane.b32.xlu0 %v119, 112
    %v175 = vpop.permute.xlu0 %174
    %vm176 = vcmp.lt.s32.totalorder %v26, 112
    %v177 = vsel %vm176, %v169, %v173
    %v178 = vsel %vm176, %v171, %v175
    %v179 = vsel %vm176, %v173, %v169
    %v180 = vsel %vm176, %v175, %v171
    %v181 = vsel %vm58, 0.0, %v177
    %v182 = vsel %vm59, 0.0, %v179
    %v183 = vsel %vm58, 0.0, %v178
    %v184 = vsel %vm59, 0.0, %v180
    %185 = vrot.lane.b32.xlu0 %v148, 16
    %v186 = vpop.permute.xlu0 %185
    %187 = vrot.lane.b32.xlu0 %v150, 16
    %v188 = vpop.permute.xlu0 %187
    %189 = vrot.lane.b32.xlu0 %v149, 16
    %v190 = vpop.permute.xlu0 %189
    %191 = vrot.lane.b32.xlu0 %v151, 16
    %v192 = vpop.permute.xlu0 %191
    %v193 = vsel %vm56, %v186, %v190
    %v194 = vsel %vm56, %v188, %v192
    %v195 = vsel %vm56, %v190, %v186
    %v196 = vsel %vm56, %v192, %v188
    %v197 = vsel %vm56, 0.0, %v195
    %v198 = vsel %vm57, 0.0, %v193
    %v199 = vsel %vm56, 0.0, %v196
    %v200 = vsel %vm57, 0.0, %v194
    %201 = vrot.lane.b32.xlu0 %v148, 112
    %v202 = vpop.permute.xlu0 %201
    %203 = vrot.lane.b32.xlu0 %v150, 112
    %v204 = vpop.permute.xlu0 %203
    %205 = vrot.lane.b32.xlu0 %v149, 112
    %v206 = vpop.permute.xlu0 %205
    %207 = vrot.lane.b32.xlu0 %v151, 112
    %v208 = vpop.permute.xlu0 %207
    %v209 = vsel %vm176, %v202, %v206
    %v210 = vsel %vm176, %v204, %v208
    %v211 = vsel %vm176, %v206, %v202
    %v212 = vsel %vm176, %v208, %v204
    %v213 = vsel %vm58, 0.0, %v209
    %v214 = vsel %vm59, 0.0, %v211
    %v215 = vsel %vm58, 0.0, %v210
    %v216 = vsel %vm59, 0.0, %v212
    %v217 = vadd.f32 %v116, %v116
    %v218 = vadd.f32 %v117, %v117
    %v219 = vadd.f32 %v118, %v118
    %v220 = vadd.f32 %v119, %v119
    %v221 = vadd.f32 %v164, %v217
    %v222 = vadd.f32 %v165, %v218
    %v223 = vadd.f32 %v166, %v219
    %v224 = vadd.f32 %v167, %v220
    %v225 = vadd.f32 %v221, %v181
    %v226 = vadd.f32 %v222, %v182
    %v227 = vadd.f32 %v223, %v183
    %v228 = vadd.f32 %v224, %v184
    %v229 = vsub.f32 %v213, %v197
    %v230 = vsub.f32 %v214, %v198
    %v231 = vsub.f32 %v215, %v199
    %v232 = vsub.f32 %v216, %v200
    %v233 = vand.u32 2147483647, %v225
    %v234 = vand.u32 2147483647, %v226
    %v235 = vand.u32 2147483647, %v227
    %v236 = vand.u32 2147483647, %v228
    %v237 = vand.u32 2147483647, %v229
    %v238 = vand.u32 2147483647, %v230
    %v239 = vand.u32 2147483647, %v231
    %v240 = vand.u32 2147483647, %v232
    %v241 = vadd.f32 %v233, %v237
    %v242 = vadd.f32 %v234, %v238
    %v243 = vadd.f32 %v235, %v239
    %v244 = vadd.f32 %v236, %v240
    %v245 = vlaneseq
    %v246 = vshrl.u32 %v245, 7
    %v247 = vsub.s32 0, %v246
    %v248 = vrot.slane %v241, %v247
    %v249 = vlaneseq
    %v250 = vshrl.u32 %v249, 7
    %v251 = vsub.s32 0, %v250
    %v252 = vrot.slane %v242, %v251
    %v253 = vlaneseq
    %v254 = vshrl.u32 %v253, 7
    %v255 = vsub.s32 0, %v254
    %v256 = vrot.slane %v243, %v255
    %v257 = vlaneseq
    %v258 = vshrl.u32 %v257, 7
    %v259 = vsub.s32 0, %v258
    %v260 = vrot.slane %v244, %v259
    %261 = vst [vmem:[#allocation5] sm:$0xff] %v248
    %262 = vst [vmem:[#allocation5 + $0x8] sm:$0xff] %v252
    %263 = vst [vmem:[#allocation5 + $0x20] sm:$0xff] %v256
    %264 = vst [vmem:[#allocation5 + $0x28] sm:$0xff] %v260
    %265 = vst [vmem:[#allocation5 + $0x10] sm:$0xff] %v248
    %266 = vst [vmem:[#allocation5 + $0x18] sm:$0xff] %v252
    %267 = vst [vmem:[#allocation5 + $0x30] sm:$0xff] %v256
    %268 = vst [vmem:[#allocation5 + $0x38] sm:$0xff] %v260
    // Predicated region
    $region10: #{tpu_custom_call.1} parent=1 // pred_check
      _
    $region11: #{tpu_custom_call.1} parent=1 // pred_check_branch
      %270 = sbr.rel (0) target = $region13
    $region12: #{tpu_custom_call.1} parent=1 // pred_region
      %s272 = ssub.s32 1024, 1024
      %273 = vsyncadd [#allocation4], %s272
      %s274 = sshll.u32 [#allocation5], 4
      %s275 = int_to_ptr.vmem [resolvable:$true] %s274
      %280 = dma.vmem_to_hbm [thread:$0]  %s275, 1024, %s1, [#allocation4], 256, 256, 16
    $region13: #{tpu_custom_call.1} parent=1 // pred_fallthru
      _
    // Predicated region
    $region14: #{tpu_custom_call.1} parent=1 // pred_check
      _
    $region15: #{tpu_custom_call.1} parent=1 // pred_check_branch
      %282 = sbr.rel (0) target = $region17
    $region16: #{tpu_custom_call.1} parent=1 // pred_region
      %283 = dma.done [#allocation4], 1024
    $region17: #{tpu_custom_call.1} parent=1 // pred_fallthru
      _
    %284 = vsyncpa [#allocation3], 1
    %285 = vsyncpa [#allocation4], 1

</llo_original>
